<compile_context>
chip_gen: v7x
topology: tpu7x:2x2x1
jax: 0.10.0
libtpu: 0.0.40
codegen_flags: <defaults>
</compile_context>

<pallas_src>
import functools

import jax
import jax.numpy as jnp
import numpy as np
from jax import lax
from jax.experimental import pallas as pl
from jax.experimental.pallas import tpu as pltpu


def _wavefront_kernel(*refs, constant_factor, w_stride, has_mask, return_voxelwise):
    idx = 0
    p_ref = refs[idx]; idx += 1
    m_ref = None
    if has_mask:
        m_ref = refs[idx]; idx += 1
    interior_ref = refs[idx]; idx += 1
    partial_ref = refs[idx]; idx += 1
    vox_ref = refs[idx] if return_voxelwise else None

    p = p_ref[...].astype(jnp.float32)                      # (bB, D, HW)

    # --- central-difference gradient magnitude (circular rolls; any wrap error
    #     lands only on face voxels, which the eroded*interior mask zeroes) ---
    gx = (jnp.roll(p, -1, axis=1) - jnp.roll(p, 1, axis=1)) * 0.5                    # D
    gy = (jnp.roll(p, -w_stride, axis=2) - jnp.roll(p, w_stride, axis=2)) * 0.5      # H
    gz = (jnp.roll(p, -1, axis=2) - jnp.roll(p, 1, axis=2)) * 0.5                    # W
    grad_mag = jnp.sqrt(jnp.clip(gx * gx + gy * gy + gz * gz, 1e-5, 1000.0))

    # --- mask & 3x3x3 erosion (separable box count; exact at interior voxels) ---
    if has_mask:
        m = (m_ref[...].astype(jnp.float32) > 0.5).astype(jnp.float32)
    else:
        m = (p > 0.001).astype(jnp.float32)

    def win3(x, axis, shift):
        return x + jnp.roll(x, -shift, axis=axis) + jnp.roll(x, shift, axis=axis)

    cnt = win3(win3(win3(m, 1, 1), 2, 1), 2, w_stride)       # 27-neighbourhood count
    interior = interior_ref[...][None, :, :]                 # (1, D, HW) broadcast
    eroded = jnp.where(cnt == 27.0, interior, 0.0)           # zero-pad semantics

    # --- voxel-wise loss ---
    cf = float(constant_factor)
    inv_cf = 1.0 / cf
    vox = (p * (1.0 - p) * cf - grad_mag) * inv_cf * eroded

    if return_voxelwise:
        vox_ref[...] = vox

    # per-step partial sum: reduce over batch (VALU adds) and D (sublane reduce),
    # keep lanes; the single cross-lane reduction + mean happens in the wrapper.
    vox2 = vox * vox
    partial_ref[...] = jnp.sum(jnp.sum(vox2, axis=0), axis=0, keepdims=True)


def wavefront_loss_first_order(predictions, constant_factor=1.0,
                               return_voxelwise=False, mask=None):
    """JAX/Pallas equivalent of WaveFrontLossFirstOrder.forward (wm/gm unused there)."""
    N, C, D, H, W = predictions.shape
    B = N * C
    HW = H * W

    p = predictions.reshape(B, D, HW)                 # native dtype; cast in-kernel

    has_mask = mask is not None
    if has_mask:
        m = jnp.asarray(mask)
        if m.dtype == jnp.bool_:
            m = m.astype(jnp.float32)
        m = m.reshape(B, D, HW)

    # Precomputed interior mask (host constant): face voxels always have zero-padded
    # 3x3x3 count < 27, so eroded must be 0 there regardless of data.
    im = np.zeros((D, H, W), np.float32)
    if D > 2 and H > 2 and W > 2:
        im[1:-1, 1:-1, 1:-1] = 1.0
    interior = jnp.asarray(im.reshape(D, HW))

    # Batch several volumes per grid step so a block is ~<= 1 MiB (amortize per-step
    # overhead for small volumes while staying VMEM-friendly on v7x).
    vol_bytes = D * HW * 4
    budget = 1 << 20
    bB = 1
    for cand in range(1, B + 1):
        if B % cand == 0 and cand * vol_bytes <= budget:
            bB = cand
    G = B // bB

    kernel = functools.partial(
        _wavefront_kernel,
        constant_factor=float(constant_factor),
        w_stride=W,
        has_mask=has_mask,
        return_voxelwise=return_voxelwise,
    )

    vol_spec = pl.BlockSpec((bB, D, HW), lambda i: (i, 0, 0))
    in_specs = [vol_spec]
    inputs = [p]
    if has_mask:
        in_specs.append(vol_spec)
        inputs.append(m)
    in_specs.append(pl.BlockSpec((D, HW), lambda i: (0, 0)))   # constant block
    inputs.append(interior)

    partial_spec = pl.BlockSpec((1, HW), lambda i: (i, 0))
    if return_voxelwise:
        out_specs = (partial_spec, vol_spec)
        out_shape = (jax.ShapeDtypeStruct((G, HW), jnp.float32),
                     jax.ShapeDtypeStruct((B, D, HW), jnp.float32))
    else:
        out_specs = partial_spec
        out_shape = jax.ShapeDtypeStruct((G, HW), jnp.float32)

    block_bytes = bB * vol_bytes
    # Generation-aware scoped-VMEM cap: enough for double-buffered blocks plus the
    # ~10 live full-block temporaries, but below v7x's 64 MiB physical VMEM.
    vmem_limit = int(min(48 * 1024 * 1024, max(16 * 1024 * 1024, 32 * block_bytes)))

    result = pl.pallas_call(
        kernel,
        grid_spec=pltpu.PrefetchScalarGridSpec(
            num_scalar_prefetch=0,
            grid=(G,),
            in_specs=in_specs,
            out_specs=out_specs,
        ),
        out_shape=out_shape,
        compiler_params=pltpu.CompilerParams(
            dimension_semantics=("parallel",),   # no cross-step state -> 2-TC friendly
            vmem_limit_bytes=vmem_limit,
        ),
    )(*inputs)

    if return_voxelwise:
        partial, vox = result
    else:
        partial = result

    loss = jnp.sum(partial) / jnp.float32(B * D * HW)
    if return_voxelwise:
        return loss, vox.reshape(N, C, D, H, W)
    return loss


def _reference(predictions, constant_factor=1.0, mask=None, return_voxelwise=False):
    """Pure-JAX reference mirroring the PyTorch forward pass."""
    p = predictions.astype(jnp.float32)
    gx = (jnp.roll(p, -1, axis=2) - jnp.roll(p, 1, axis=2)) / 2
    gy = (jnp.roll(p, -1, axis=3) - jnp.roll(p, 1, axis=3)) / 2
    gz = (jnp.roll(p, -1, axis=4) - jnp.roll(p, 1, axis=4)) / 2
    gm = jnp.sqrt(jnp.clip(gx ** 2 + gy ** 2 + gz ** 2, 1e-5, 1000.0))
    if mask is None:
        m = (p > 0.001).astype(jnp.float32)
    else:
        m = (jnp.asarray(mask).astype(jnp.float32) > 0.5).astype(jnp.float32)
    N, C = p.shape[:2]
    kernel = jnp.ones((1, 1, 3, 3, 3), jnp.float32)
    m2 = m.reshape(N * C, 1, *p.shape[2:])
    cnt = lax.conv_general_dilated(
        m2, kernel, window_strides=(1, 1, 1), padding=[(1, 1)] * 3,
        dimension_numbers=("NCDHW", "OIDHW", "NCDHW")).reshape(p.shape)
    eroded = (cnt == 27.0).astype(jnp.float32)
    cf = constant_factor
    vox = (p * (1.0 - p) * cf - gm) / cf * eroded
    loss = jnp.mean(jnp.abs(vox) ** 2)
    if return_voxelwise:
        return loss, vox
    return loss


if __name__ == "__main__":
    key = jax.random.PRNGKey(0)
    N, C, D, H, W = 2, 1, 8, 16, 16
    k1, k2 = jax.random.split(key)
    predictions = jax.random.uniform(k1, (N, C, D, H, W), dtype=jnp.float32)

    # --- loss-only path (no voxelwise HBM writeback) ---
    loss = wavefront_loss_first_order(predictions, constant_factor=1.0)
    loss = jax.block_until_ready(loss)
    ref = _reference(predictions, constant_factor=1.0)
    assert np.allclose(np.asarray(loss), np.asarray(ref), rtol=1e-5, atol=1e-6), (
        float(loss), float(ref))

    # --- voxelwise + explicit mask path ---
    mask = (jax.random.uniform(k2, (N, C, D, H, W)) > 0.3).astype(jnp.float32)
    loss2, vox2 = wavefront_loss_first_order(
        predictions, constant_factor=2.0, return_voxelwise=True, mask=mask)
    loss2, vox2 = jax.block_until_ready((loss2, vox2))
    ref2, refvox2 = _reference(predictions, constant_factor=2.0, mask=mask,
                               return_voxelwise=True)
    assert np.allclose(np.asarray(loss2), np.asarray(ref2), rtol=1e-5, atol=1e-6), (
        float(loss2), float(ref2))
    assert np.allclose(np.asarray(vox2), np.asarray(refvox2), rtol=1e-5, atol=1e-5)

    print("KERNEL_OK")
</pallas_src>

<mosaic_0001>
module attributes {stable_mosaic.version = 11 : i64} {
  func.func @_wavefront_kernel(%arg0: i32, %arg1: memref<2x8x256xf32, #tpu.memory_space<vmem>>, %arg2: memref<8x256xf32, #tpu.memory_space<vmem>>, %arg3: memref<1x256xf32, #tpu.memory_space<vmem>>) attributes {dimension_semantics = [#tpu.dimension_semantics<parallel>], iteration_bounds = array<i64: 1>, scalar_prefetch = 0 : i64, scratch_operands = 0 : i64, tpu.core_type = #tpu.core_type<tc>, window_params = [{transform_indices = @transform_0, window_bounds = array<i64: 2, 8, 256>}, {pipeline_mode = #tpu.pipeline_mode<synchronous>, transform_indices = @transform_1, window_bounds = array<i64: 8, 256>}, {transform_indices = @transform_2, window_bounds = array<i64: 1, 256>}]} {
    %c0 = arith.constant 0 : index
    %c0_0 = arith.constant 0 : index
    %c0_1 = arith.constant 0 : index
    %0 = vector.load %arg1[%c0, %c0_0, %c0_1] : memref<2x8x256xf32, #tpu.memory_space<vmem>>, vector<2x8x256xf32>
    %1 = vector.extract_strided_slice %0 {offsets = [0, 1, 0], sizes = [2, 7, 256], strides = [1, 1, 1]} : vector<2x8x256xf32> to vector<2x7x256xf32>
    %2 = vector.extract_strided_slice %0 {offsets = [0, 0, 0], sizes = [2, 1, 256], strides = [1, 1, 1]} : vector<2x8x256xf32> to vector<2x1x256xf32>
    %3 = tpu.concatenate %1, %2 in 1 : vector<2x7x256xf32>, vector<2x1x256xf32> -> vector<2x8x256xf32>
    %4 = vector.extract_strided_slice %0 {offsets = [0, 7, 0], sizes = [2, 1, 256], strides = [1, 1, 1]} : vector<2x8x256xf32> to vector<2x1x256xf32>
    %5 = vector.extract_strided_slice %0 {offsets = [0, 0, 0], sizes = [2, 7, 256], strides = [1, 1, 1]} : vector<2x8x256xf32> to vector<2x7x256xf32>
    %6 = tpu.concatenate %4, %5 in 1 : vector<2x1x256xf32>, vector<2x7x256xf32> -> vector<2x8x256xf32>
    %7 = arith.subf %3, %6 : vector<2x8x256xf32>
    %cst = arith.constant 5.000000e-01 : f32
    %8 = vector.broadcast %cst : f32 to vector<2x8x256xf32>
    %9 = arith.mulf %7, %8 : vector<2x8x256xf32>
    %10 = vector.extract_strided_slice %0 {offsets = [0, 0, 16], sizes = [2, 8, 240], strides = [1, 1, 1]} : vector<2x8x256xf32> to vector<2x8x240xf32>
    %11 = vector.extract_strided_slice %0 {offsets = [0, 0, 0], sizes = [2, 8, 16], strides = [1, 1, 1]} : vector<2x8x256xf32> to vector<2x8x16xf32>
    %12 = tpu.concatenate %10, %11 in 2 : vector<2x8x240xf32>, vector<2x8x16xf32> -> vector<2x8x256xf32>
    %13 = vector.extract_strided_slice %0 {offsets = [0, 0, 240], sizes = [2, 8, 16], strides = [1, 1, 1]} : vector<2x8x256xf32> to vector<2x8x16xf32>
    %14 = vector.extract_strided_slice %0 {offsets = [0, 0, 0], sizes = [2, 8, 240], strides = [1, 1, 1]} : vector<2x8x256xf32> to vector<2x8x240xf32>
    %15 = tpu.concatenate %13, %14 in 2 : vector<2x8x16xf32>, vector<2x8x240xf32> -> vector<2x8x256xf32>
    %16 = arith.subf %12, %15 : vector<2x8x256xf32>
    %cst_2 = arith.constant 5.000000e-01 : f32
    %17 = vector.broadcast %cst_2 : f32 to vector<2x8x256xf32>
    %18 = arith.mulf %16, %17 : vector<2x8x256xf32>
    %19 = vector.extract_strided_slice %0 {offsets = [0, 0, 1], sizes = [2, 8, 255], strides = [1, 1, 1]} : vector<2x8x256xf32> to vector<2x8x255xf32>
    %20 = vector.extract_strided_slice %0 {offsets = [0, 0, 0], sizes = [2, 8, 1], strides = [1, 1, 1]} : vector<2x8x256xf32> to vector<2x8x1xf32>
    %21 = tpu.concatenate %19, %20 in 2 : vector<2x8x255xf32>, vector<2x8x1xf32> -> vector<2x8x256xf32>
    %22 = vector.extract_strided_slice %0 {offsets = [0, 0, 255], sizes = [2, 8, 1], strides = [1, 1, 1]} : vector<2x8x256xf32> to vector<2x8x1xf32>
    %23 = vector.extract_strided_slice %0 {offsets = [0, 0, 0], sizes = [2, 8, 255], strides = [1, 1, 1]} : vector<2x8x256xf32> to vector<2x8x255xf32>
    %24 = tpu.concatenate %22, %23 in 2 : vector<2x8x1xf32>, vector<2x8x255xf32> -> vector<2x8x256xf32>
    %25 = arith.subf %21, %24 : vector<2x8x256xf32>
    %cst_3 = arith.constant 5.000000e-01 : f32
    %26 = vector.broadcast %cst_3 : f32 to vector<2x8x256xf32>
    %27 = arith.mulf %25, %26 : vector<2x8x256xf32>
    %28 = arith.mulf %9, %9 : vector<2x8x256xf32>
    %29 = arith.mulf %18, %18 : vector<2x8x256xf32>
    %30 = arith.addf %28, %29 : vector<2x8x256xf32>
    %31 = arith.mulf %27, %27 : vector<2x8x256xf32>
    %32 = arith.addf %30, %31 : vector<2x8x256xf32>
    %cst_4 = arith.constant 9.99999974E-6 : f32
    %cst_5 = arith.constant 1.000000e+03 : f32
    %33 = vector.broadcast %cst_4 : f32 to vector<2x8x256xf32>
    %34 = arith.maximumf %33, %32 : vector<2x8x256xf32>
    %35 = vector.broadcast %cst_5 : f32 to vector<2x8x256xf32>
    %36 = arith.minimumf %35, %34 : vector<2x8x256xf32>
    %37 = math.sqrt %36 : vector<2x8x256xf32>
    %cst_6 = arith.constant 1.000000e-03 : f32
    %38 = vector.broadcast %cst_6 : f32 to vector<2x8x256xf32>
    %39 = arith.cmpf ogt, %0, %38 : vector<2x8x256xf32>
    %40 = arith.extui %39 : vector<2x8x256xi1> to vector<2x8x256xi32>
    %41 = arith.sitofp %40 : vector<2x8x256xi32> to vector<2x8x256xf32>
    %42 = vector.extract_strided_slice %41 {offsets = [0, 1, 0], sizes = [2, 7, 256], strides = [1, 1, 1]} : vector<2x8x256xf32> to vector<2x7x256xf32>
    %43 = vector.extract_strided_slice %41 {offsets = [0, 0, 0], sizes = [2, 1, 256], strides = [1, 1, 1]} : vector<2x8x256xf32> to vector<2x1x256xf32>
    %44 = tpu.concatenate %42, %43 in 1 : vector<2x7x256xf32>, vector<2x1x256xf32> -> vector<2x8x256xf32>
    %45 = arith.addf %41, %44 : vector<2x8x256xf32>
    %46 = vector.extract_strided_slice %41 {offsets = [0, 7, 0], sizes = [2, 1, 256], strides = [1, 1, 1]} : vector<2x8x256xf32> to vector<2x1x256xf32>
    %47 = vector.extract_strided_slice %41 {offsets = [0, 0, 0], sizes = [2, 7, 256], strides = [1, 1, 1]} : vector<2x8x256xf32> to vector<2x7x256xf32>
    %48 = tpu.concatenate %46, %47 in 1 : vector<2x1x256xf32>, vector<2x7x256xf32> -> vector<2x8x256xf32>
    %49 = arith.addf %45, %48 : vector<2x8x256xf32>
    %50 = vector.extract_strided_slice %49 {offsets = [0, 0, 1], sizes = [2, 8, 255], strides = [1, 1, 1]} : vector<2x8x256xf32> to vector<2x8x255xf32>
    %51 = vector.extract_strided_slice %49 {offsets = [0, 0, 0], sizes = [2, 8, 1], strides = [1, 1, 1]} : vector<2x8x256xf32> to vector<2x8x1xf32>
    %52 = tpu.concatenate %50, %51 in 2 : vector<2x8x255xf32>, vector<2x8x1xf32> -> vector<2x8x256xf32>
    %53 = arith.addf %49, %52 : vector<2x8x256xf32>
    %54 = vector.extract_strided_slice %49 {offsets = [0, 0, 255], sizes = [2, 8, 1], strides = [1, 1, 1]} : vector<2x8x256xf32> to vector<2x8x1xf32>
    %55 = vector.extract_strided_slice %49 {offsets = [0, 0, 0], sizes = [2, 8, 255], strides = [1, 1, 1]} : vector<2x8x256xf32> to vector<2x8x255xf32>
    %56 = tpu.concatenate %54, %55 in 2 : vector<2x8x1xf32>, vector<2x8x255xf32> -> vector<2x8x256xf32>
    %57 = arith.addf %53, %56 : vector<2x8x256xf32>
    %58 = vector.extract_strided_slice %57 {offsets = [0, 0, 16], sizes = [2, 8, 240], strides = [1, 1, 1]} : vector<2x8x256xf32> to vector<2x8x240xf32>
    %59 = vector.extract_strided_slice %57 {offsets = [0, 0, 0], sizes = [2, 8, 16], strides = [1, 1, 1]} : vector<2x8x256xf32> to vector<2x8x16xf32>
    %60 = tpu.concatenate %58, %59 in 2 : vector<2x8x240xf32>, vector<2x8x16xf32> -> vector<2x8x256xf32>
    %61 = arith.addf %57, %60 : vector<2x8x256xf32>
    %62 = vector.extract_strided_slice %57 {offsets = [0, 0, 240], sizes = [2, 8, 16], strides = [1, 1, 1]} : vector<2x8x256xf32> to vector<2x8x16xf32>
    %63 = vector.extract_strided_slice %57 {offsets = [0, 0, 0], sizes = [2, 8, 240], strides = [1, 1, 1]} : vector<2x8x256xf32> to vector<2x8x240xf32>
    %64 = tpu.concatenate %62, %63 in 2 : vector<2x8x16xf32>, vector<2x8x240xf32> -> vector<2x8x256xf32>
    %65 = arith.addf %61, %64 : vector<2x8x256xf32>
    %c0_7 = arith.constant 0 : index
    %c0_8 = arith.constant 0 : index
    %66 = vector.load %arg2[%c0_7, %c0_8] : memref<8x256xf32, #tpu.memory_space<vmem>>, vector<8x256xf32>
    %67 = vector.shape_cast %66 : vector<8x256xf32> to vector<1x8x256xf32>
    %cst_9 = arith.constant 2.700000e+01 : f32
    %68 = vector.broadcast %cst_9 : f32 to vector<2x8x256xf32>
    %69 = arith.cmpf oeq, %65, %68 : vector<2x8x256xf32>
    %cst_10 = arith.constant 0.000000e+00 : f32
    %70 = vector.shape_cast %67 : vector<1x8x256xf32> to vector<1x8x256xf32>
    %71 = vector.broadcast %70 : vector<1x8x256xf32> to vector<2x8x256xf32>
    %72 = vector.broadcast %cst_10 : f32 to vector<2x8x256xf32>
    %73 = arith.select %69, %71, %72 : vector<2x8x256xi1>, vector<2x8x256xf32>
    %cst_11 = arith.constant 1.000000e+00 : f32
    %74 = vector.broadcast %cst_11 : f32 to vector<2x8x256xf32>
    %75 = arith.subf %74, %0 : vector<2x8x256xf32>
    %76 = arith.mulf %0, %75 : vector<2x8x256xf32>
    %cst_12 = arith.constant 1.000000e+00 : f32
    %77 = vector.broadcast %cst_12 : f32 to vector<2x8x256xf32>
    %78 = arith.mulf %76, %77 : vector<2x8x256xf32>
    %79 = arith.subf %78, %37 : vector<2x8x256xf32>
    %cst_13 = arith.constant 1.000000e+00 : f32
    %80 = vector.broadcast %cst_13 : f32 to vector<2x8x256xf32>
    %81 = arith.mulf %79, %80 : vector<2x8x256xf32>
    %82 = arith.mulf %81, %73 : vector<2x8x256xf32>
    %83 = arith.mulf %82, %82 : vector<2x8x256xf32>
    %cst_14 = arith.constant dense<0.000000e+00> : vector<8x256xf32>
    %84 = vector.multi_reduction <add>, %83, %cst_14 [0] : vector<2x8x256xf32> to vector<8x256xf32>
    %cst_15 = arith.constant dense<0.000000e+00> : vector<256xf32>
    %85 = vector.multi_reduction <add>, %84, %cst_15 [0] : vector<8x256xf32> to vector<256xf32>
    %86 = vector.shape_cast %85 : vector<256xf32> to vector<1x256xf32>
    %c0_16 = arith.constant 0 : index
    %c0_17 = arith.constant 0 : index
    %87 = vector.load %arg3[%c0_16, %c0_17] : memref<1x256xf32, #tpu.memory_space<vmem>>, vector<1x256xf32>
    tpu.vector_store %arg3[%c0_16, %c0_17], %86 {strides = array<i32>} : memref<1x256xf32, #tpu.memory_space<vmem>>, vector<1x256xf32>,
    return
  }
  func.func @transform_0(%arg0: i32) -> (i32, i32, i32) {
    %c0_i32 = arith.constant 0 : i32
    %c0_i32_0 = arith.constant 0 : i32
    %c0_i32_1 = arith.constant 0 : i32
    return %arg0, %c0_i32, %c0_i32_0 : i32, i32, i32
  }
  func.func @transform_1(%arg0: i32) -> (i32, i32) {
    %c0_i32 = arith.constant 0 : i32
    %c0_i32_0 = arith.constant 0 : i32
    %c0_i32_1 = arith.constant 0 : i32
    return %c0_i32, %c0_i32_0 : i32, i32
  }
  func.func @transform_2(%arg0: i32) -> (i32, i32) {
    %c0_i32 = arith.constant 0 : i32
    %c0_i32_0 = arith.constant 0 : i32
    return %arg0, %c0_i32 : i32, i32
  }
}

</mosaic_0001>

<llo_original>
// kernel: tpu_custom_call.1
$region0: #{tpu_custom_call.1}
  #allocation0 [shape = 'u32[]', space=smem, size = 0x4, offset = 0x4, fixed_abs, tag = 'smem constant byte address 0x4 - core index']
  #allocation1 [shape = 'u32[144,128]{1,0:T(1,128)}', space=vmem, size = 0x12000, scoped, tag = 'internal scratch']
  %s0 = inlined_call_operand.hbm [shape: f32[2,8,256], index: 0, kind: input, shape index: {}]
  %s1 = inlined_call_operand.hbm [shape: f32[8,256], index: 1, kind: input, shape index: {}]
  %s2 = inlined_call_operand.hbm [shape: f32[1,256], index: 2, kind: output, shape index: {}]
  %s3 = sld [smem:[#allocation0]]
  $region26: #{tpu_custom_call.1} parent=0
    _
  %s5 = ssub.s32 1, %s3
  %s6 = scalar_select 0, %s5, %s3
  $region1: #{tpu_custom_call.1} parent=0
    #allocation2 [shape = 'u8[16384]{0}', space=vmem, size = 0x4000, scoped, tag = 'input window, operand 0, single buffered']
    #allocation3 [shape = 's32[1]{0}', space=sflag, size = 0x4, scoped, tag = 'scoped memory for tpu_custom_call.1']
    #allocation4 [shape = 's32[1]{0}', space=sflag, size = 0x4, scoped, tag = 'scoped memory for tpu_custom_call.1']
    #allocation5 [shape = 'u8[8192]{0}', space=vmem, size = 0x2000, scoped, tag = 'input window, operand 1, single buffered']
    #allocation6 [shape = 's32[1]{0}', space=sflag, size = 0x4, scoped, tag = 'scoped memory for tpu_custom_call.1']
    #allocation7 [shape = 'u8[1024]{0}', space=vmem, size = 0x400, scoped, tag = 'output window, operand 0, single buffered']
    %7 = vsyncpa [#allocation3], 0
    %8 = vsyncpa [#allocation6], 0
    %9 = vsyncpa [#allocation4], 0
    // Predicated region
    $region2: #{tpu_custom_call.1} parent=1 // pred_check
      _
    $region3: #{tpu_custom_call.1} parent=1 // pred_check_branch
      %11 = sbr.rel (0) target = $region5
    $region4: #{tpu_custom_call.1} parent=1 // pred_region
      %s13 = ssub.s32 512, 512
      %14 = vsyncadd [#allocation3], %s13
      %s15 = sshll.u32 [#allocation2], 4
      %s16 = int_to_ptr.vmem [resolvable:$true] %s15
      %21 = dma.hbm_to_vmem [thread:$0]  %s0, 512, %s16, [#allocation3], 256, 256, 16
    $region5: #{tpu_custom_call.1} parent=1 // pred_fallthru
      _
    // Predicated region
    $region6: #{tpu_custom_call.1} parent=1 // pred_check
      _
    $region7: #{tpu_custom_call.1} parent=1 // pred_check_branch
      %23 = sbr.rel (0) target = $region9
    $region8: #{tpu_custom_call.1} parent=1 // pred_region
      %s25 = ssub.s32 256, 256
      %26 = vsyncadd [#allocation6], %s25
      %s28 = sshll.u32 [#allocation5], 4
      %s29 = int_to_ptr.vmem [resolvable:$true] %s28
      %31 = dma.hbm_to_vmem [thread:$0]  %s1, 256, %s29, [#allocation6]
    $region9: #{tpu_custom_call.1} parent=1 // pred_fallthru
      _
    // Predicated region
    $region10: #{tpu_custom_call.1} parent=1 // pred_check
      _
    $region11: #{tpu_custom_call.1} parent=1 // pred_check_branch
      %33 = sbr.rel (0) target = $region13
    $region12: #{tpu_custom_call.1} parent=1 // pred_region
      %34 = dma.done [#allocation3], 512
    $region13: #{tpu_custom_call.1} parent=1 // pred_fallthru
      _
    // Predicated region
    $region14: #{tpu_custom_call.1} parent=1 // pred_check
      _
    $region15: #{tpu_custom_call.1} parent=1 // pred_check_branch
      %36 = sbr.rel (0) target = $region17
    $region16: #{tpu_custom_call.1} parent=1 // pred_region
      %37 = dma.done [#allocation6], 256
    $region17: #{tpu_custom_call.1} parent=1 // pred_fallthru
      _
    %v38 = vld [vmem:[#allocation2] sm:$0xff]
    %v39 = vld [vmem:[#allocation2 + $0x8] sm:$0xff]
    %v40 = vld [vmem:[#allocation2 + $0x10] sm:$0xff]
    %v41 = vld [vmem:[#allocation2 + $0x18] sm:$0xff]
    %v46 = vrot.slane %v38, 1
    %v47 = vrot.slane %v39, 1
    %v48 = vrot.slane %v40, 1
    %v49 = vrot.slane %v41, 1
    %vm54 = vcmask 1046528
    %v55 = vsel %vm54, %v46, %v46
    %v56 = vsel %vm54, %v47, %v47
    %v57 = vsel %vm54, %v48, %v48
    %v58 = vsel %vm54, %v49, %v49
    %v59 = vrot.slane %v38, 7
    %v60 = vrot.slane %v39, 7
    %v61 = vrot.slane %v40, 7
    %v62 = vrot.slane %v41, 7
    %vm67 = vcmask 1040384
    %v68 = vsel %vm67, %v59, %v59
    %v69 = vsel %vm67, %v60, %v60
    %v70 = vsel %vm67, %v61, %v61
    %v71 = vsel %vm67, %v62, %v62
    %v72 = vsub.f32 %v55, %v68
    %v73 = vsub.f32 %v56, %v69
    %v74 = vsub.f32 %v57, %v70
    %v75 = vsub.f32 %v58, %v71
    %v76 = vmul.f32 %v72, 0.5
    %v77 = vmul.f32 %v73, 0.5
    %v78 = vmul.f32 %v74, 0.5
    %v79 = vmul.f32 %v75, 0.5
    %80 = vrot.lane.b32.xlu0 %v38, 112
    %v81 = vpop.permute.xlu0 %80
    %82 = vrot.lane.b32.xlu0 %v39, 112
    %v83 = vpop.permute.xlu0 %82
    %84 = vrot.lane.b32.xlu0 %v40, 112
    %v85 = vpop.permute.xlu0 %84
    %86 = vrot.lane.b32.xlu0 %v41, 112
    %v87 = vpop.permute.xlu0 %86
    %vm88 = vcmask 916480
    %v89 = vsel %vm88, %v81, %v83
    %v90 = vsel %vm88, %v85, %v87
    %v97 = vsel %vm88, %v83, %v81
    %v98 = vsel %vm88, %v87, %v85
    %99 = vrot.lane.b32.xlu0 %v39, 16
    %v100 = vpop.permute.xlu0 %99
    %101 = vrot.lane.b32.xlu0 %v41, 16
    %v102 = vpop.permute.xlu0 %101
    %105 = vrot.lane.b32.xlu0 %v38, 16
    %v106 = vpop.permute.xlu0 %105
    %107 = vrot.lane.b32.xlu0 %v40, 16
    %v108 = vpop.permute.xlu0 %107
    %vm109 = vcmask 130048
    %v110 = vsel %vm109, %v106, %v100
    %v111 = vsel %vm109, %v108, %v102
    %v116 = vsel %vm109, %v100, %v106
    %v117 = vsel %vm109, %v102, %v108
    %v118 = vsub.f32 %v89, %v116
    %v119 = vsub.f32 %v97, %v110
    %v120 = vsub.f32 %v90, %v117
    %v121 = vsub.f32 %v98, %v111
    %v122 = vmul.f32 %v118, 0.5
    %v123 = vmul.f32 %v119, 0.5
    %v124 = vmul.f32 %v120, 0.5
    %v125 = vmul.f32 %v121, 0.5
    %126 = vrot.lane.b32.xlu0 %v38, 127
    %v127 = vpop.permute.xlu0 %126
    %128 = vrot.lane.b32.xlu0 %v39, 127
    %v129 = vpop.permute.xlu0 %128
    %130 = vrot.lane.b32.xlu0 %v40, 127
    %v131 = vpop.permute.xlu0 %130
    %132 = vrot.lane.b32.xlu0 %v41, 127
    %v133 = vpop.permute.xlu0 %132
    %vm134 = vcmask 1039360
    %v135 = vsel %vm134, %v127, %v129
    %v136 = vsel %vm134, %v131, %v133
    %v143 = vsel %vm134, %v129, %v127
    %v144 = vsel %vm134, %v133, %v131
    %145 = vrot.lane.b32.xlu0 %v39, 1
    %v146 = vpop.permute.xlu0 %145
    %147 = vrot.lane.b32.xlu0 %v41, 1
    %v148 = vpop.permute.xlu0 %147
    %151 = vrot.lane.b32.xlu0 %v38, 1
    %v152 = vpop.permute.xlu0 %151
    %153 = vrot.lane.b32.xlu0 %v40, 1
    %v154 = vpop.permute.xlu0 %153
    %vm155 = vcmask 7168
    %v156 = vsel %vm155, %v152, %v146
    %v157 = vsel %vm155, %v154, %v148
    %v162 = vsel %vm155, %v146, %v152
    %v163 = vsel %vm155, %v148, %v154
    %v164 = vsub.f32 %v135, %v162
    %v165 = vsub.f32 %v143, %v156
    %v166 = vsub.f32 %v136, %v163
    %v167 = vsub.f32 %v144, %v157
    %v168 = vmul.f32 %v164, 0.5
    %v169 = vmul.f32 %v165, 0.5
    %v170 = vmul.f32 %v166, 0.5
    %v171 = vmul.f32 %v167, 0.5
    %v172 = vmul.f32 %v76, %v76
    %v173 = vmul.f32 %v77, %v77
    %v174 = vmul.f32 %v78, %v78
    %v175 = vmul.f32 %v79, %v79
    %v176 = vmul.f32 %v122, %v122
    %v177 = vmul.f32 %v123, %v123
    %v178 = vmul.f32 %v124, %v124
    %v179 = vmul.f32 %v125, %v125
    %v180 = vadd.f32 %v172, %v176
    %v181 = vadd.f32 %v173, %v177
    %v182 = vadd.f32 %v174, %v178
    %v183 = vadd.f32 %v175, %v179
    %v184 = vmul.f32 %v168, %v168
    %v185 = vmul.f32 %v169, %v169
    %v186 = vmul.f32 %v170, %v170
    %v187 = vmul.f32 %v171, %v171
    %v188 = vadd.f32 %v180, %v184
    %v189 = vadd.f32 %v181, %v185
    %v190 = vadd.f32 %v182, %v186
    %v191 = vadd.f32 %v183, %v187
    %v192 = vmax.f32 %v188, 1e-05
    %v193 = vmax.f32 %v189, 1e-05
    %v194 = vmax.f32 %v190, 1e-05
    %v195 = vmax.f32 %v191, 1e-05
    %v196 = vmin.f32 %v192, 1000.0
    %v197 = vmin.f32 %v193, 1000.0
    %v198 = vmin.f32 %v194, 1000.0
    %v199 = vmin.f32 %v195, 1000.0
    %v200 = vrsqrt.pop %v196
    %v201 = vmul.f32 %v196, %v200
    %vm202 = vcmp.eq.f32.partialorder %v196, inf
    %v203 = vsel %vm202, %v196, %v201
    %vm204 = vcmp.eq.f32.partialorder %v196, 0.0
    %v205 = vand.u32 %v196, 2147483648
    %v206 = vsel %vm204, %v205, %v203
    %v207 = vrsqrt.pop %v197
    %v208 = vmul.f32 %v197, %v207
    %vm209 = vcmp.eq.f32.partialorder %v197, inf
    %v210 = vsel %vm209, %v197, %v208
    %vm211 = vcmp.eq.f32.partialorder %v197, 0.0
    %v212 = vand.u32 %v197, 2147483648
    %v213 = vsel %vm211, %v212, %v210
    %v214 = vrsqrt.pop %v198
    %v215 = vmul.f32 %v198, %v214
    %vm216 = vcmp.eq.f32.partialorder %v198, inf
    %v217 = vsel %vm216, %v198, %v215
    %vm218 = vcmp.eq.f32.partialorder %v198, 0.0
    %v219 = vand.u32 %v198, 2147483648
    %v220 = vsel %vm218, %v219, %v217
    %v221 = vrsqrt.pop %v199
    %v222 = vmul.f32 %v199, %v221
    %vm223 = vcmp.eq.f32.partialorder %v199, inf
    %v224 = vsel %vm223, %v199, %v222
    %vm225 = vcmp.eq.f32.partialorder %v199, 0.0
    %v226 = vand.u32 %v199, 2147483648
    %v227 = vsel %vm225, %v226, %v224
    %vm228 = vcmp.gt.f32.partialorder %v38, 0.001
    %vm229 = vcmp.gt.f32.partialorder %v39, 0.001
    %vm230 = vcmp.gt.f32.partialorder %v40, 0.001
    %vm231 = vcmp.gt.f32.partialorder %v41, 0.001
    %v232 = vsel %vm228, 1, 0
    %v233 = vsel %vm229, 1, 0
    %v234 = vsel %vm230, 1, 0
    %v235 = vsel %vm231, 1, 0
    %v236 = vcvt.s32.f32 %v232
    %v237 = vcvt.s32.f32 %v233
    %v238 = vcvt.s32.f32 %v234
    %v239 = vcvt.s32.f32 %v235
    %v244 = vrot.slane %v236, 1
    %v245 = vrot.slane %v237, 1
    %v246 = vrot.slane %v238, 1
    %v247 = vrot.slane %v239, 1
    %v252 = vsel %vm54, %v244, %v244
    %v253 = vsel %vm54, %v245, %v245
    %v254 = vsel %vm54, %v246, %v246
    %v255 = vsel %vm54, %v247, %v247
    %v256 = vadd.f32 %v236, %v252
    %v257 = vadd.f32 %v237, %v253
    %v258 = vadd.f32 %v238, %v254
    %v259 = vadd.f32 %v239, %v255
    %v260 = vrot.slane %v236, 7
    %v261 = vrot.slane %v237, 7
    %v262 = vrot.slane %v238, 7
    %v263 = vrot.slane %v239, 7
    %v268 = vsel %vm67, %v260, %v260
    %v269 = vsel %vm67, %v261, %v261
    %v270 = vsel %vm67, %v262, %v262
    %v271 = vsel %vm67, %v263, %v263
    %v272 = vadd.f32 %v256, %v268
    %v273 = vadd.f32 %v257, %v269
    %v274 = vadd.f32 %v258, %v270
    %v275 = vadd.f32 %v259, %v271
    %280 = vrot.lane.b32.xlu0 %v272, 127
    %v281 = vpop.permute.xlu0 %280
    %282 = vrot.lane.b32.xlu0 %v273, 127
    %v283 = vpop.permute.xlu0 %282
    %284 = vrot.lane.b32.xlu0 %v274, 127
    %v285 = vpop.permute.xlu0 %284
    %286 = vrot.lane.b32.xlu0 %v275, 127
    %v287 = vpop.permute.xlu0 %286
    %v288 = vsel %vm134, %v281, %v283
    %v289 = vsel %vm134, %v285, %v287
    %v296 = vsel %vm134, %v283, %v281
    %v297 = vsel %vm134, %v287, %v285
    %v298 = vadd.f32 %v272, %v288
    %v299 = vadd.f32 %v273, %v296
    %v300 = vadd.f32 %v274, %v289
    %v301 = vadd.f32 %v275, %v297
    %302 = vrot.lane.b32.xlu0 %v273, 1
    %v303 = vpop.permute.xlu0 %302
    %304 = vrot.lane.b32.xlu0 %v275, 1
    %v305 = vpop.permute.xlu0 %304
    %308 = vrot.lane.b32.xlu0 %v272, 1
    %v309 = vpop.permute.xlu0 %308
    %310 = vrot.lane.b32.xlu0 %v274, 1
    %v311 = vpop.permute.xlu0 %310
    %v312 = vsel %vm155, %v309, %v303
    %v313 = vsel %vm155, %v311, %v305
    %v318 = vsel %vm155, %v303, %v309
    %v319 = vsel %vm155, %v305, %v311
    %v320 = vadd.f32 %v298, %v318
    %v321 = vadd.f32 %v299, %v312
    %v322 = vadd.f32 %v300, %v319
    %v323 = vadd.f32 %v301, %v313
    %328 = vrot.lane.b32.xlu0 %v320, 112
    %v329 = vpop.permute.xlu0 %328
    %330 = vrot.lane.b32.xlu0 %v321, 112
    %v331 = vpop.permute.xlu0 %330
    %332 = vrot.lane.b32.xlu0 %v322, 112
    %v333 = vpop.permute.xlu0 %332
    %334 = vrot.lane.b32.xlu0 %v323, 112
    %v335 = vpop.permute.xlu0 %334
    %v336 = vsel %vm88, %v329, %v331
    %v337 = vsel %vm88, %v333, %v335
    %v344 = vsel %vm88, %v331, %v329
    %v345 = vsel %vm88, %v335, %v333
    %v346 = vadd.f32 %v320, %v336
    %v347 = vadd.f32 %v321, %v344
    %v348 = vadd.f32 %v322, %v337
    %v349 = vadd.f32 %v323, %v345
    %350 = vrot.lane.b32.xlu0 %v321, 16
    %v351 = vpop.permute.xlu0 %350
    %352 = vrot.lane.b32.xlu0 %v323, 16
    %v353 = vpop.permute.xlu0 %352
    %356 = vrot.lane.b32.xlu0 %v320, 16
    %v357 = vpop.permute.xlu0 %356
    %358 = vrot.lane.b32.xlu0 %v322, 16
    %v359 = vpop.permute.xlu0 %358
    %v360 = vsel %vm109, %v357, %v351
    %v361 = vsel %vm109, %v359, %v353
    %v366 = vsel %vm109, %v351, %v357
    %v367 = vsel %vm109, %v353, %v359
    %v368 = vadd.f32 %v346, %v366
    %v369 = vadd.f32 %v347, %v360
    %v370 = vadd.f32 %v348, %v367
    %v371 = vadd.f32 %v349, %v361
    %v372 = vld [vmem:[#allocation5] sm:$0xff]
    %v373 = vld [vmem:[#allocation5 + $0x8] sm:$0xff]
    %vm374 = vcmp.eq.f32.partialorder %v368, 27.0
    %vm375 = vcmp.eq.f32.partialorder %v369, 27.0
    %vm376 = vcmp.eq.f32.partialorder %v370, 27.0
    %vm377 = vcmp.eq.f32.partialorder %v371, 27.0
    %v378 = vsel %vm374, %v372, 0.0
    %v379 = vsel %vm375, %v373, 0.0
    %v380 = vsel %vm376, %v372, 0.0
    %v381 = vsel %vm377, %v373, 0.0
    %v382 = vsub.f32 1.0, %v38
    %v383 = vsub.f32 1.0, %v39
    %v384 = vsub.f32 1.0, %v40
    %v385 = vsub.f32 1.0, %v41
    %v386 = vmul.f32 %v38, %v382
    %v387 = vmul.f32 %v39, %v383
    %v388 = vmul.f32 %v40, %v384
    %v389 = vmul.f32 %v41, %v385
    %v390 = vsub.f32 %v386, %v206
    %v391 = vsub.f32 %v387, %v213
    %v392 = vsub.f32 %v388, %v220
    %v393 = vsub.f32 %v389, %v227
    %v394 = vmul.f32 %v390, %v378
    %v395 = vmul.f32 %v391, %v379
    %v396 = vmul.f32 %v392, %v380
    %v397 = vmul.f32 %v393, %v381
    %v398 = vmul.f32 %v394, %v394
    %v399 = vmul.f32 %v395, %v395
    %v400 = vmul.f32 %v396, %v396
    %v401 = vmul.f32 %v397, %v397
    %v402 = vadd.f32 %v398, %v400
    %v403 = vadd.f32 %v399, %v401
    %v404 = vrot.slane %v402, 4
    %v405 = vadd.f32 %v402, %v404
    %v406 = vrot.slane %v405, 2
    %v407 = vadd.f32 %v405, %v406
    %v408 = vrot.slane %v407, 1
    %v409 = vadd.f32 %v407, %v408
    %v410 = vrot.slane %v403, 4
    %v411 = vadd.f32 %v403, %v410
    %v412 = vrot.slane %v411, 2
    %v413 = vadd.f32 %v411, %v412
    %v414 = vrot.slane %v413, 1
    %v415 = vadd.f32 %v413, %v414
    %v418 = vcombine.low %v409, %v415
    %v420 = vunpack.c.l.s4 1966171168
    %v421 = vunpack.c.0.s8 %v420
    %v422 = vlaneseq
    %v423 = vshrl.u32 %v422, 7
    %v424 = vsub.s32 %v421, %v423
    %v425 = vrot.slane %v418, %v424
    %v427 = vunpack.c.l.s4 1966171168
    %v428 = vunpack.c.0.s8 %v427
    %v429 = vlaneseq
    %v430 = vshrl.u32 %v429, 7
    %v431 = vsub.s32 %v428, %v430
    %v432 = vrot.slane %v425, %v431
    %v434 = vlaneseq
    %vm435 = vcmp.ge.s32.totalorder %v434, 0
    %vm436 = vcmp.lt.s32.totalorder %v434, 256
    %vm437 = vmand %vm435, %vm436
    %438 = vst.msk [vmem:[#allocation7] sm:$0x3] %vm437, %v432
    // Predicated region
    $region18: #{tpu_custom_call.1} parent=1 // pred_check
      _
    $region19: #{tpu_custom_call.1} parent=1 // pred_check_branch
      %440 = sbr.rel (0) target = $region21
    $region20: #{tpu_custom_call.1} parent=1 // pred_region
      %s442 = ssub.s32 32, 32
      %443 = vsyncadd [#allocation4], %s442
      %s445 = sshll.u32 [#allocation7], 4
      %s446 = int_to_ptr.vmem [resolvable:$true] %s445
      %448 = dma.vmem_to_hbm [thread:$0]  %s446, 32, %s2, [#allocation4]
    $region21: #{tpu_custom_call.1} parent=1 // pred_fallthru
      _
    // Predicated region
    $region22: #{tpu_custom_call.1} parent=1 // pred_check
      _
    $region23: #{tpu_custom_call.1} parent=1 // pred_check_branch
      %450 = sbr.rel (0) target = $region25
    $region24: #{tpu_custom_call.1} parent=1 // pred_region
      %451 = dma.done [#allocation4], 32
    $region25: #{tpu_custom_call.1} parent=1 // pred_fallthru
      _
    %452 = vsyncpa [#allocation3], 1
    %453 = vsyncpa [#allocation6], 1
    %454 = vsyncpa [#allocation4], 1

</llo_original>
